<compile_context>
chip_gen: v5e
topology: v5e:2x2
jax: 0.10.0
libtpu: 0.0.40
codegen_flags: <defaults>
</compile_context>

<pallas_src>
from functools import partial

import jax
import jax.numpy as jnp
from jax import lax
from jax.experimental import pallas as pl
from jax.experimental.pallas import tpu as pltpu


def _round_up(x, m):
    return ((x + m - 1) // m) * m


def _samp_prob_partials_kernel(loss_ref, cat_ref, s_ref, c_ref, *, K):
    """One grid step: accumulate per-lane per-category partial sums into the
    resident (Kp8, 128) output blocks.

      s_ref[k, lane] += sum_r loss[r, lane] * (cat[r, lane] == k)
      c_ref[k, lane] += sum_r (cat[r, lane] == k)

    Cross-lane reduction, softmax(p) and the 1/count weighting happen in a
    tiny plain-JAX epilogue."""
    t = pl.program_id(1)

    @pl.when(t == 0)
    def _():
        s_ref[...] = jnp.zeros_like(s_ref)
        c_ref[...] = jnp.zeros_like(c_ref)

    loss = loss_ref[...]                      # (R, 128) f32, sublane-dense
    cat = cat_ref[...].astype(jnp.int32)      # widen int8 tile once per step

    if K <= 32:
        # Fully unrolled: one f32 mask per category, sublane-only reductions.
        for k in range(K):
            m = (cat == k).astype(jnp.float32)
            s_ref[pl.ds(k, 1), :] += jnp.sum(m * loss, axis=0, keepdims=True)
            c_ref[pl.ds(k, 1), :] += jnp.sum(m, axis=0, keepdims=True)
    else:
        # Bounded trace size / vreg pressure for larger K.
        # TODO(synk): for K >~ 128 consider a one-hot MXU matmul formulation.
        def body(k, carry):
            m = (cat == k).astype(jnp.float32)
            s_ref[pl.ds(k, 1), :] += jnp.sum(m * loss, axis=0, keepdims=True)
            c_ref[pl.ds(k, 1), :] += jnp.sum(m, axis=0, keepdims=True)
            return carry

        lax.fori_loop(0, K, body, 0)


def samp_prob_loss(p, per_sample_loss, per_sample_category, *,
                   block_rows=2048, num_cores=2):
    """Wrapper: lay 1-D inputs out as (rows, 128) sublane-dense tiles (padding
    only the ragged tail), stream them through the Pallas kernel to get
    per-core per-lane per-category partials, then finish in plain JAX."""
    K = int(p.shape[0])
    N = int(per_sample_loss.shape[0])
    Kp8 = _round_up(max(K, 1), 8)

    # int8 categories (K plus the sentinel value must fit) -> ~half HBM bytes.
    cat_dtype = jnp.int8 if K <= 127 else jnp.int32
    row_align = 32 if cat_dtype == jnp.int8 else 8   # packed-tile row alignment

    rows_needed = max(1, pl.cdiv(N, 128))
    rows_pad = _round_up(rows_needed, row_align)
    R = min(_round_up(int(block_rows), row_align), rows_pad)   # tile rows
    tiles_total = pl.cdiv(rows_pad, R)
    tiles_per_core = pl.cdiv(tiles_total, num_cores)
    rows_total = num_cores * tiles_per_core * R
    pad = rows_total * 128 - N

    loss = per_sample_loss.astype(jnp.float32)
    cat = per_sample_category.astype(cat_dtype)
    if pad:
        loss = jnp.pad(loss, (0, pad))
        cat = jnp.pad(cat, (0, pad), constant_values=K)   # sentinel: never matches
    loss2d = loss.reshape(rows_total, 128)
    cat2d = cat.reshape(rows_total, 128)

    kernel = partial(_samp_prob_partials_kernel, K=K)
    s_part, c_part = pl.pallas_call(
        kernel,
        out_shape=(
            jax.ShapeDtypeStruct((num_cores, Kp8, 128), jnp.float32),
            jax.ShapeDtypeStruct((num_cores, Kp8, 128), jnp.float32),
        ),
        grid_spec=pltpu.PrefetchScalarGridSpec(
            num_scalar_prefetch=0,
            grid=(num_cores, tiles_per_core),
            in_specs=[
                pl.BlockSpec((R, 128), lambda c, t: (c * tiles_per_core + t, 0)),
                pl.BlockSpec((R, 128), lambda c, t: (c * tiles_per_core + t, 0)),
            ],
            out_specs=[
                pl.BlockSpec((None, Kp8, 128), lambda c, t: (c, 0, 0)),
                pl.BlockSpec((None, Kp8, 128), lambda c, t: (c, 0, 0)),
            ],
        ),
        compiler_params=pltpu.CompilerParams(
            dimension_semantics=("parallel", "arbitrary"),
        ),
    )(loss2d, cat2d)

    # Tiny epilogue in plain JAX: combine cores & lanes, apply softmax(p) and
    # the 1/count weighting.  Empty categories have S_k == 0, so the max(C,1)
    # guard is exactly equivalent to the reference.
    S = jnp.sum(s_part, axis=(0, 2))[:K]
    C = jnp.sum(c_part, axis=(0, 2))[:K]
    samp_prob = jax.nn.softmax(p.astype(jnp.float32), axis=0)
    return jnp.sum(samp_prob * S / jnp.maximum(C, 1.0))


def samp_prob_loss_ref(p, per_sample_loss, per_sample_category):
    """Pure-JAX reference matching the PyTorch forward."""
    sp = jax.nn.softmax(p.astype(jnp.float32), axis=0)
    w = sp[per_sample_category]
    counts = jnp.bincount(per_sample_category, length=p.shape[0]).astype(jnp.float32)
    weight = (1.0 / counts[per_sample_category]) * w
    return jnp.dot(weight, per_sample_loss.astype(jnp.float32))


if __name__ == "__main__":
    num_partitions = 4
    n_samples = 16

    # Deterministic parameter init, mirroring SampProb.__init__: p = zeros(K).
    p = jnp.zeros((num_partitions,), dtype=jnp.float32)

    key = jax.random.PRNGKey(0)
    k_loss, k_cat = jax.random.split(key)
    per_sample_loss = jax.random.normal(k_loss, (n_samples,), dtype=jnp.float32)
    per_sample_category = jax.random.randint(
        k_cat, (n_samples,), 0, num_partitions, dtype=jnp.int32)

    out = samp_prob_loss(p, per_sample_loss, per_sample_category)
    out = jax.block_until_ready(out)

    ref = samp_prob_loss_ref(p, per_sample_loss, per_sample_category)
    assert jnp.allclose(out, ref, atol=1e-5, rtol=1e-5), (out, ref)

    print("KERNEL_OK")
</pallas_src>

<mosaic_0001>
module attributes {stable_mosaic.version = 11 : i64} {
  func.func @_samp_prob_partials_kernel(%arg0: i32, %arg1: i32, %arg2: memref<32x128xf32, #tpu.memory_space<vmem>>, %arg3: memref<32x128xi8, #tpu.memory_space<vmem>>, %arg4: memref<1x8x128xf32, #tpu.memory_space<vmem>>, %arg5: memref<1x8x128xf32, #tpu.memory_space<vmem>>) attributes {dimension_semantics = [#tpu.dimension_semantics<parallel>, #tpu.dimension_semantics<arbitrary>], iteration_bounds = array<i64: 2, 1>, scalar_prefetch = 0 : i64, scratch_operands = 0 : i64, tpu.core_type = #tpu.core_type<tc>, window_params = [{transform_indices = @transform_0, window_bounds = array<i64: 32, 128>}, {transform_indices = @transform_1, window_bounds = array<i64: 32, 128>}, {transform_indices = @transform_2, window_bounds = array<i64: 1, 8, 128>}, {transform_indices = @transform_3, window_bounds = array<i64: 1, 8, 128>}]} {
    %c0_i32 = arith.constant 0 : i32
    %0 = arith.cmpi eq, %arg1, %c0_i32 : i32
    %1 = arith.extui %0 : i1 to i32
    %c0_i32_0 = arith.constant 0 : i32
    %2 = arith.cmpi ne, %1, %c0_i32_0 : i32
    scf.if %2 {
      %cst_57 = arith.constant 0.000000e+00 : f32
      %90 = vector.broadcast %cst_57 : f32 to vector<8x128xf32>
      %c0_58 = arith.constant 0 : index
      %c0_59 = arith.constant 0 : index
      %c0_60 = arith.constant 0 : index
      %91 = vector.load %arg4[%c0_58, %c0_59, %c0_60] : memref<1x8x128xf32, #tpu.memory_space<vmem>>, vector<1x8x128xf32>
      %92 = vector.shape_cast %91 : vector<1x8x128xf32> to vector<8x128xf32>
      %93 = vector.shape_cast %90 : vector<8x128xf32> to vector<1x8x128xf32>
      tpu.vector_store %arg4[%c0_58, %c0_59, %c0_60], %93 {strides = array<i32>} : memref<1x8x128xf32, #tpu.memory_space<vmem>>, vector<1x8x128xf32>,
      %cst_61 = arith.constant 0.000000e+00 : f32
      %94 = vector.broadcast %cst_61 : f32 to vector<8x128xf32>
      %c0_62 = arith.constant 0 : index
      %c0_63 = arith.constant 0 : index
      %c0_64 = arith.constant 0 : index
      %95 = vector.load %arg5[%c0_62, %c0_63, %c0_64] : memref<1x8x128xf32, #tpu.memory_space<vmem>>, vector<1x8x128xf32>
      %96 = vector.shape_cast %95 : vector<1x8x128xf32> to vector<8x128xf32>
      %97 = vector.shape_cast %94 : vector<8x128xf32> to vector<1x8x128xf32>
      tpu.vector_store %arg5[%c0_62, %c0_63, %c0_64], %97 {strides = array<i32>} : memref<1x8x128xf32, #tpu.memory_space<vmem>>, vector<1x8x128xf32>,
    } else {
    }
    %c0 = arith.constant 0 : index
    %c0_1 = arith.constant 0 : index
    %3 = vector.load %arg2[%c0, %c0_1] : memref<32x128xf32, #tpu.memory_space<vmem>>, vector<32x128xf32>
    %c0_2 = arith.constant 0 : index
    %c0_3 = arith.constant 0 : index
    %4 = vector.load %arg3[%c0_2, %c0_3] : memref<32x128xi8, #tpu.memory_space<vmem>>, vector<32x128xi8>
    %5 = arith.extsi %4 : vector<32x128xi8> to vector<32x128xi32>
    %c0_i32_4 = arith.constant 0 : i32
    %6 = vector.broadcast %c0_i32_4 : i32 to vector<32x128xi32>
    %7 = arith.cmpi eq, %5, %6 : vector<32x128xi32>
    %8 = arith.extui %7 : vector<32x128xi1> to vector<32x128xi32>
    %9 = arith.sitofp %8 : vector<32x128xi32> to vector<32x128xf32>
    %c0_5 = arith.constant 0 : index
    %c0_6 = arith.constant 0 : index
    %c0_7 = arith.constant 0 : index
    %10 = vector.load %arg4[%c0_5, %c0_6, %c0_7] : memref<1x8x128xf32, #tpu.memory_space<vmem>>, vector<1x1x128xf32>
    %11 = vector.shape_cast %10 : vector<1x1x128xf32> to vector<1x128xf32>
    %12 = arith.mulf %9, %3 : vector<32x128xf32>
    %cst = arith.constant dense<0.000000e+00> : vector<128xf32>
    %13 = vector.multi_reduction <add>, %12, %cst [0] : vector<32x128xf32> to vector<128xf32>
    %14 = vector.shape_cast %13 : vector<128xf32> to vector<1x128xf32>
    %15 = arith.addf %11, %14 : vector<1x128xf32>
    %c0_8 = arith.constant 0 : index
    %c0_9 = arith.constant 0 : index
    %c0_10 = arith.constant 0 : index
    %16 = vector.load %arg4[%c0_8, %c0_9, %c0_10] : memref<1x8x128xf32, #tpu.memory_space<vmem>>, vector<1x1x128xf32>
    %17 = vector.shape_cast %16 : vector<1x1x128xf32> to vector<1x128xf32>
    %18 = vector.shape_cast %15 : vector<1x128xf32> to vector<1x1x128xf32>
    tpu.vector_store %arg4[%c0_8, %c0_9, %c0_10], %18 {strides = array<i32>} : memref<1x8x128xf32, #tpu.memory_space<vmem>>, vector<1x1x128xf32>,
    %c0_11 = arith.constant 0 : index
    %c0_12 = arith.constant 0 : index
    %c0_13 = arith.constant 0 : index
    %19 = vector.load %arg5[%c0_11, %c0_12, %c0_13] : memref<1x8x128xf32, #tpu.memory_space<vmem>>, vector<1x1x128xf32>
    %20 = vector.shape_cast %19 : vector<1x1x128xf32> to vector<1x128xf32>
    %cst_14 = arith.constant dense<0.000000e+00> : vector<128xf32>
    %21 = vector.multi_reduction <add>, %9, %cst_14 [0] : vector<32x128xf32> to vector<128xf32>
    %22 = vector.shape_cast %21 : vector<128xf32> to vector<1x128xf32>
    %23 = arith.addf %20, %22 : vector<1x128xf32>
    %c0_15 = arith.constant 0 : index
    %c0_16 = arith.constant 0 : index
    %c0_17 = arith.constant 0 : index
    %24 = vector.load %arg5[%c0_15, %c0_16, %c0_17] : memref<1x8x128xf32, #tpu.memory_space<vmem>>, vector<1x1x128xf32>
    %25 = vector.shape_cast %24 : vector<1x1x128xf32> to vector<1x128xf32>
    %26 = vector.shape_cast %23 : vector<1x128xf32> to vector<1x1x128xf32>
    tpu.vector_store %arg5[%c0_15, %c0_16, %c0_17], %26 {strides = array<i32>} : memref<1x8x128xf32, #tpu.memory_space<vmem>>, vector<1x1x128xf32>,
    %c1_i32 = arith.constant 1 : i32
    %27 = vector.broadcast %c1_i32 : i32 to vector<32x128xi32>
    %28 = arith.cmpi eq, %5, %27 : vector<32x128xi32>
    %29 = arith.extui %28 : vector<32x128xi1> to vector<32x128xi32>
    %30 = arith.sitofp %29 : vector<32x128xi32> to vector<32x128xf32>
    %c0_18 = arith.constant 0 : index
    %c1 = arith.constant 1 : index
    %c0_19 = arith.constant 0 : index
    %31 = vector.load %arg4[%c0_18, %c1, %c0_19] : memref<1x8x128xf32, #tpu.memory_space<vmem>>, vector<1x1x128xf32>
    %32 = vector.shape_cast %31 : vector<1x1x128xf32> to vector<1x128xf32>
    %33 = arith.mulf %30, %3 : vector<32x128xf32>
    %cst_20 = arith.constant dense<0.000000e+00> : vector<128xf32>
    %34 = vector.multi_reduction <add>, %33, %cst_20 [0] : vector<32x128xf32> to vector<128xf32>
    %35 = vector.shape_cast %34 : vector<128xf32> to vector<1x128xf32>
    %36 = arith.addf %32, %35 : vector<1x128xf32>
    %c0_21 = arith.constant 0 : index
    %c1_22 = arith.constant 1 : index
    %c0_23 = arith.constant 0 : index
    %37 = vector.load %arg4[%c0_21, %c1_22, %c0_23] : memref<1x8x128xf32, #tpu.memory_space<vmem>>, vector<1x1x128xf32>
    %38 = vector.shape_cast %37 : vector<1x1x128xf32> to vector<1x128xf32>
    %39 = vector.shape_cast %36 : vector<1x128xf32> to vector<1x1x128xf32>
    tpu.vector_store %arg4[%c0_21, %c1_22, %c0_23], %39 {strides = array<i32>} : memref<1x8x128xf32, #tpu.memory_space<vmem>>, vector<1x1x128xf32>,
    %c0_24 = arith.constant 0 : index
    %c1_25 = arith.constant 1 : index
    %c0_26 = arith.constant 0 : index
    %40 = vector.load %arg5[%c0_24, %c1_25, %c0_26] : memref<1x8x128xf32, #tpu.memory_space<vmem>>, vector<1x1x128xf32>
    %41 = vector.shape_cast %40 : vector<1x1x128xf32> to vector<1x128xf32>
    %cst_27 = arith.constant dense<0.000000e+00> : vector<128xf32>
    %42 = vector.multi_reduction <add>, %30, %cst_27 [0] : vector<32x128xf32> to vector<128xf32>
    %43 = vector.shape_cast %42 : vector<128xf32> to vector<1x128xf32>
    %44 = arith.addf %41, %43 : vector<1x128xf32>
    %c0_28 = arith.constant 0 : index
    %c1_29 = arith.constant 1 : index
    %c0_30 = arith.constant 0 : index
    %45 = vector.load %arg5[%c0_28, %c1_29, %c0_30] : memref<1x8x128xf32, #tpu.memory_space<vmem>>, vector<1x1x128xf32>
    %46 = vector.shape_cast %45 : vector<1x1x128xf32> to vector<1x128xf32>
    %47 = vector.shape_cast %44 : vector<1x128xf32> to vector<1x1x128xf32>
    tpu.vector_store %arg5[%c0_28, %c1_29, %c0_30], %47 {strides = array<i32>} : memref<1x8x128xf32, #tpu.memory_space<vmem>>, vector<1x1x128xf32>,
    %c2_i32 = arith.constant 2 : i32
    %48 = vector.broadcast %c2_i32 : i32 to vector<32x128xi32>
    %49 = arith.cmpi eq, %5, %48 : vector<32x128xi32>
    %50 = arith.extui %49 : vector<32x128xi1> to vector<32x128xi32>
    %51 = arith.sitofp %50 : vector<32x128xi32> to vector<32x128xf32>
    %c0_31 = arith.constant 0 : index
    %c2 = arith.constant 2 : index
    %c0_32 = arith.constant 0 : index
    %52 = vector.load %arg4[%c0_31, %c2, %c0_32] : memref<1x8x128xf32, #tpu.memory_space<vmem>>, vector<1x1x128xf32>
    %53 = vector.shape_cast %52 : vector<1x1x128xf32> to vector<1x128xf32>
    %54 = arith.mulf %51, %3 : vector<32x128xf32>
    %cst_33 = arith.constant dense<0.000000e+00> : vector<128xf32>
    %55 = vector.multi_reduction <add>, %54, %cst_33 [0] : vector<32x128xf32> to vector<128xf32>
    %56 = vector.shape_cast %55 : vector<128xf32> to vector<1x128xf32>
    %57 = arith.addf %53, %56 : vector<1x128xf32>
    %c0_34 = arith.constant 0 : index
    %c2_35 = arith.constant 2 : index
    %c0_36 = arith.constant 0 : index
    %58 = vector.load %arg4[%c0_34, %c2_35, %c0_36] : memref<1x8x128xf32, #tpu.memory_space<vmem>>, vector<1x1x128xf32>
    %59 = vector.shape_cast %58 : vector<1x1x128xf32> to vector<1x128xf32>
    %60 = vector.shape_cast %57 : vector<1x128xf32> to vector<1x1x128xf32>
    tpu.vector_store %arg4[%c0_34, %c2_35, %c0_36], %60 {strides = array<i32>} : memref<1x8x128xf32, #tpu.memory_space<vmem>>, vector<1x1x128xf32>,
    %c0_37 = arith.constant 0 : index
    %c2_38 = arith.constant 2 : index
    %c0_39 = arith.constant 0 : index
    %61 = vector.load %arg5[%c0_37, %c2_38, %c0_39] : memref<1x8x128xf32, #tpu.memory_space<vmem>>, vector<1x1x128xf32>
    %62 = vector.shape_cast %61 : vector<1x1x128xf32> to vector<1x128xf32>
    %cst_40 = arith.constant dense<0.000000e+00> : vector<128xf32>
    %63 = vector.multi_reduction <add>, %51, %cst_40 [0] : vector<32x128xf32> to vector<128xf32>
    %64 = vector.shape_cast %63 : vector<128xf32> to vector<1x128xf32>
    %65 = arith.addf %62, %64 : vector<1x128xf32>
    %c0_41 = arith.constant 0 : index
    %c2_42 = arith.constant 2 : index
    %c0_43 = arith.constant 0 : index
    %66 = vector.load %arg5[%c0_41, %c2_42, %c0_43] : memref<1x8x128xf32, #tpu.memory_space<vmem>>, vector<1x1x128xf32>
    %67 = vector.shape_cast %66 : vector<1x1x128xf32> to vector<1x128xf32>
    %68 = vector.shape_cast %65 : vector<1x128xf32> to vector<1x1x128xf32>
    tpu.vector_store %arg5[%c0_41, %c2_42, %c0_43], %68 {strides = array<i32>} : memref<1x8x128xf32, #tpu.memory_space<vmem>>, vector<1x1x128xf32>,
    %c3_i32 = arith.constant 3 : i32
    %69 = vector.broadcast %c3_i32 : i32 to vector<32x128xi32>
    %70 = arith.cmpi eq, %5, %69 : vector<32x128xi32>
    %71 = arith.extui %70 : vector<32x128xi1> to vector<32x128xi32>
    %72 = arith.sitofp %71 : vector<32x128xi32> to vector<32x128xf32>
    %c0_44 = arith.constant 0 : index
    %c3 = arith.constant 3 : index
    %c0_45 = arith.constant 0 : index
    %73 = vector.load %arg4[%c0_44, %c3, %c0_45] : memref<1x8x128xf32, #tpu.memory_space<vmem>>, vector<1x1x128xf32>
    %74 = vector.shape_cast %73 : vector<1x1x128xf32> to vector<1x128xf32>
    %75 = arith.mulf %72, %3 : vector<32x128xf32>
    %cst_46 = arith.constant dense<0.000000e+00> : vector<128xf32>
    %76 = vector.multi_reduction <add>, %75, %cst_46 [0] : vector<32x128xf32> to vector<128xf32>
    %77 = vector.shape_cast %76 : vector<128xf32> to vector<1x128xf32>
    %78 = arith.addf %74, %77 : vector<1x128xf32>
    %c0_47 = arith.constant 0 : index
    %c3_48 = arith.constant 3 : index
    %c0_49 = arith.constant 0 : index
    %79 = vector.load %arg4[%c0_47, %c3_48, %c0_49] : memref<1x8x128xf32, #tpu.memory_space<vmem>>, vector<1x1x128xf32>
    %80 = vector.shape_cast %79 : vector<1x1x128xf32> to vector<1x128xf32>
    %81 = vector.shape_cast %78 : vector<1x128xf32> to vector<1x1x128xf32>
    tpu.vector_store %arg4[%c0_47, %c3_48, %c0_49], %81 {strides = array<i32>} : memref<1x8x128xf32, #tpu.memory_space<vmem>>, vector<1x1x128xf32>,
    %c0_50 = arith.constant 0 : index
    %c3_51 = arith.constant 3 : index
    %c0_52 = arith.constant 0 : index
    %82 = vector.load %arg5[%c0_50, %c3_51, %c0_52] : memref<1x8x128xf32, #tpu.memory_space<vmem>>, vector<1x1x128xf32>
    %83 = vector.shape_cast %82 : vector<1x1x128xf32> to vector<1x128xf32>
    %cst_53 = arith.constant dense<0.000000e+00> : vector<128xf32>
    %84 = vector.multi_reduction <add>, %72, %cst_53 [0] : vector<32x128xf32> to vector<128xf32>
    %85 = vector.shape_cast %84 : vector<128xf32> to vector<1x128xf32>
    %86 = arith.addf %83, %85 : vector<1x128xf32>
    %c0_54 = arith.constant 0 : index
    %c3_55 = arith.constant 3 : index
    %c0_56 = arith.constant 0 : index
    %87 = vector.load %arg5[%c0_54, %c3_55, %c0_56] : memref<1x8x128xf32, #tpu.memory_space<vmem>>, vector<1x1x128xf32>
    %88 = vector.shape_cast %87 : vector<1x1x128xf32> to vector<1x128xf32>
    %89 = vector.shape_cast %86 : vector<1x128xf32> to vector<1x1x128xf32>
    tpu.vector_store %arg5[%c0_54, %c3_55, %c0_56], %89 {strides = array<i32>} : memref<1x8x128xf32, #tpu.memory_space<vmem>>, vector<1x1x128xf32>,
    return
  }
  func.func @transform_0(%arg0: i32, %arg1: i32) -> (i32, i32) {
    %c1_i32 = arith.constant 1 : i32
    %0 = arith.muli %arg0, %c1_i32 : i32
    %1 = arith.addi %0, %arg1 : i32
    %c0_i32 = arith.constant 0 : i32
    %c0_i32_0 = arith.constant 0 : i32
    return %1, %c0_i32 : i32, i32
  }
  func.func @transform_1(%arg0: i32, %arg1: i32) -> (i32, i32) {
    %c1_i32 = arith.constant 1 : i32
    %0 = arith.muli %arg0, %c1_i32 : i32
    %1 = arith.addi %0, %arg1 : i32
    %c0_i32 = arith.constant 0 : i32
    %c0_i32_0 = arith.constant 0 : i32
    return %1, %c0_i32 : i32, i32
  }
  func.func @transform_2(%arg0: i32, %arg1: i32) -> (i32, i32, i32) {
    %c0_i32 = arith.constant 0 : i32
    %c0_i32_0 = arith.constant 0 : i32
    %c0_i32_1 = arith.constant 0 : i32
    return %arg0, %c0_i32, %c0_i32_0 : i32, i32, i32
  }
  func.func @transform_3(%arg0: i32, %arg1: i32) -> (i32, i32, i32) {
    %c0_i32 = arith.constant 0 : i32
    %c0_i32_0 = arith.constant 0 : i32
    %c0_i32_1 = arith.constant 0 : i32
    return %arg0, %c0_i32, %c0_i32_0 : i32, i32, i32
  }
}

</mosaic_0001>

<llo_original>
// kernel: tpu_custom_call.1
$region0: #{tpu_custom_call.1}
  #allocation0 [shape = 'u32[]', space=smem, size = 0x4, offset = 0x4, fixed_abs, tag = 'smem constant byte address 0x4 - core index']
  #allocation1 [shape = 'u32[72,128]{1,0:T(1,128)}', space=vmem, size = 0x9000, scoped, tag = 'internal scratch']
  %s0 = inlined_call_operand.hbm [shape: f32[64,128], index: 0, kind: input, shape index: {}]
  %s1 = inlined_call_operand.hbm [shape: s8[64,128], index: 1, kind: input, shape index: {}]
  %s2 = inlined_call_operand.hbm [shape: f32[2,8,128], index: 2, kind: output, shape index: {0}]
  %s3 = inlined_call_operand.hbm [shape: f32[2,8,128], index: 3, kind: output, shape index: {1}]
  %4 = xla_tuple %s2, %s3
  %s5 = sld [smem:[#allocation0]]
  $region61: #{tpu_custom_call.1} parent=0
    _
  %s7 = ssub.s32 1, %s5
  %s8 = scalar_select 0, %s7, %s5
  $region1: #{tpu_custom_call.1} parent=0
    #allocation2 [shape = 'u8[32768]{0}', space=vmem, size = 0x8000, scoped, tag = 'input window, operand 0']
    #allocation3 [shape = 's32[2]{0}', space=sflag, size = 0x8, scoped, tag = 'scoped memory for tpu_custom_call.1']
    #allocation4 [shape = 's32[2]{0}', space=sflag, size = 0x8, scoped, tag = 'scoped memory for tpu_custom_call.1']
    #allocation5 [shape = 'u8[8192]{0}', space=vmem, size = 0x2000, scoped, tag = 'input window, operand 1']
    #allocation6 [shape = 's32[2]{0}', space=sflag, size = 0x8, scoped, tag = 'scoped memory for tpu_custom_call.1']
    #allocation7 [shape = 'u8[8192]{0}', space=vmem, size = 0x2000, scoped, tag = 'output window, operand 0']
    #allocation8 [shape = 'u8[8192]{0}', space=vmem, size = 0x2000, scoped, tag = 'output window, operand 1']
    #allocation9 [shape = 's32[2]{0}', space=sflag, size = 0x8, scoped, tag = 'scoped memory for tpu_custom_call.1']
    %9 = vsyncpa [#allocation3], 0
    %s10 = scalar_lea.sflag [#allocation3], 1
    %11 = vsyncpa %s10, 0
    %12 = vsyncpa [#allocation6], 0
    %s13 = scalar_lea.sflag [#allocation6], 1
    %14 = vsyncpa %s13, 0
    %15 = vsyncpa [#allocation4], 0
    %s16 = scalar_lea.sflag [#allocation4], 1
    %17 = vsyncpa %s16, 0
    %18 = vsyncpa [#allocation9], 0
    %s19 = scalar_lea.sflag [#allocation9], 1
    %20 = vsyncpa %s19, 0
    loop: start=0, step=1, limit=4
    $region2: #{tpu_custom_call.1} parent=1 // loop_pre_header
      _
    $region3: #{tpu_custom_call.1} parent=1 // loop_header
      %s22 = sphi 0, %s26
      %p23 = scmp.ge.s32.totalorder %s22, 4
      %s29 = sphi 0, %s41
      %s30 = sphi 0, %s37
      %s31 = sphi 0, %s29
      %s32 = sphi 0, %s30
      %s33 = sphi 0, %s31
      %s34 = sphi 0, %s32
      %s46 = sphi 0, %s48
      %s49 = sphi 0, %s46
      %s50 = sphi 0, %s49
      %s66 = sphi 0, %s50
      %s74 = sphi 0, %s76
      %s77 = sphi 0, %s74
      %s78 = sphi 0, %s77
      %s94 = sphi 0, %s78
      %s100 = sphi 0, %s102
      %s103 = sphi 0, %s100
      %s104 = sphi 0, %s103
      %s120 = sphi 0, %s104
      %s126 = sphi 0, %s128
      %s129 = sphi 0, %s126
      %s130 = sphi 0, %s129
      %s146 = sphi 0, %s130
    $region4: #{tpu_custom_call.1} parent=1 // loop_header_branch
      %25 = sbr.rel (%p23) target = $region8
    $region5: #{tpu_custom_call.1} parent=1 // loop_body
      %s27 = ssub.s32 %s22, 1
      %s28 = ssub.s32 %s22, 2
      %s35 = sadd.s32 1, %s30
      %p36 = scmp.ge.s32.totalorder %s35, 1
      %s37 = scalar_select %p36, 0, %s35
      %s38 = sadd.s32 1, %s29
      %s39 = scalar_select %p36, %s38, %s29
      %p40 = scmp.ge.s32.totalorder %s39, 2
      %s41 = scalar_select %p40, 0, %s39
      %s42 = sadd.s32 %s29, %s30
      %s43 = sadd.s32 %s41, %s37
      %s44 = ssub.s32 %s42, %s43
      %p45 = scmp.eq.s32.totalorder %s44, 0
      %s47 = sadd.s32 %s46, 1
      %s48 = scalar_select %p45, %s46, %s47
      %p51 = pneg %p45
      %p52 = scmp.eq.s32.totalorder %s22, 1
      %p53 = por %p51, %p52
      %p54 = scmp.ne.s32.totalorder %s46, %s49
      %p55 = scmp.eq.s32.totalorder %s22, 0
      %p56 = por %p54, %p55
      %p57 = scmp.ne.s32.totalorder %s46, %s49
      %p58 = scmp.eq.s32.totalorder %s27, 1
      %p59 = por %p57, %p58
      %p60 = scmp.ne.s32.totalorder %s49, %s50
      %p61 = scmp.eq.s32.totalorder %s27, 0
      %p62 = por %p60, %p61
      %p63 = scmp.ne.s32.totalorder %s49, %s50
      %p64 = scmp.eq.s32.totalorder %s28, 1
      %p65 = por %p63, %p64
      %p67 = scmp.ne.s32.totalorder %s50, %s66
      %p68 = scmp.eq.s32.totalorder %s28, 0
      %p69 = por %p67, %p68
      %s70 = sadd.s32 %s29, %s30
      %s71 = sadd.s32 %s41, %s37
      %s72 = ssub.s32 %s70, %s71
      %p73 = scmp.eq.s32.totalorder %s72, 0
      %s75 = sadd.s32 %s74, 1
      %s76 = scalar_select %p73, %s74, %s75
      %p79 = pneg %p73
      %p80 = scmp.eq.s32.totalorder %s22, 1
      %p81 = por %p79, %p80
      %p82 = scmp.ne.s32.totalorder %s74, %s77
      %p83 = scmp.eq.s32.totalorder %s22, 0
      %p84 = por %p82, %p83
      %p85 = scmp.ne.s32.totalorder %s74, %s77
      %p86 = scmp.eq.s32.totalorder %s27, 1
      %p87 = por %p85, %p86
      %p88 = scmp.ne.s32.totalorder %s77, %s78
      %p89 = scmp.eq.s32.totalorder %s27, 0
      %p90 = por %p88, %p89
      %p91 = scmp.ne.s32.totalorder %s77, %s78
      %p92 = scmp.eq.s32.totalorder %s28, 1
      %p93 = por %p91, %p92
      %p95 = scmp.ne.s32.totalorder %s78, %s94
      %p96 = scmp.eq.s32.totalorder %s28, 0
      %p97 = por %p95, %p96
      %s98 = ssub.s32 %s29, %s41
      %p99 = scmp.eq.s32.totalorder %s98, 0
      %s101 = sadd.s32 %s100, 1
      %s102 = scalar_select %p99, %s100, %s101
      %p105 = pneg %p99
      %p106 = scmp.eq.s32.totalorder %s22, 1
      %p107 = por %p105, %p106
      %p108 = scmp.ne.s32.totalorder %s100, %s103
      %p109 = scmp.eq.s32.totalorder %s22, 0
      %p110 = por %p108, %p109
      %p111 = scmp.ne.s32.totalorder %s100, %s103
      %p112 = scmp.eq.s32.totalorder %s27, 1
      %p113 = por %p111, %p112
      %p114 = scmp.ne.s32.totalorder %s103, %s104
      %p115 = scmp.eq.s32.totalorder %s27, 0
      %p116 = por %p114, %p115
      %p117 = scmp.ne.s32.totalorder %s103, %s104
      %p118 = scmp.eq.s32.totalorder %s28, 1
      %p119 = por %p117, %p118
      %p121 = scmp.ne.s32.totalorder %s104, %s120
      %p122 = scmp.eq.s32.totalorder %s28, 0
      %p123 = por %p121, %p122
      %s124 = ssub.s32 %s29, %s41
      %p125 = scmp.eq.s32.totalorder %s124, 0
      %s127 = sadd.s32 %s126, 1
      %s128 = scalar_select %p125, %s126, %s127
      %p131 = pneg %p125
      %p132 = scmp.eq.s32.totalorder %s22, 1
      %p133 = por %p131, %p132
      %p134 = scmp.ne.s32.totalorder %s126, %s129
      %p135 = scmp.eq.s32.totalorder %s22, 0
      %p136 = por %p134, %p135
      %p137 = scmp.ne.s32.totalorder %s126, %s129
      %p138 = scmp.eq.s32.totalorder %s27, 1
      %p139 = por %p137, %p138
      %p140 = scmp.ne.s32.totalorder %s129, %s130
      %p141 = scmp.eq.s32.totalorder %s27, 0
      %p142 = por %p140, %p141
      %p143 = scmp.ne.s32.totalorder %s129, %s130
      %p144 = scmp.eq.s32.totalorder %s28, 1
      %p145 = por %p143, %p144
      %p147 = scmp.ne.s32.totalorder %s130, %s146
      %p148 = scmp.eq.s32.totalorder %s28, 0
      %p149 = por %p147, %p148
      %p150 = scmp.le.s32.totalorder 1, %s22
      %p151 = scmp.lt.s32.totalorder %s22, 3
      %p152 = pnand %p150, %p151
      %p153 = pneg %p152
      // Predicated region
      $region9: #{tpu_custom_call.1} parent=5 // pred_check
        _
      $region10: #{tpu_custom_call.1} parent=5 // pred_check_branch
        %155 = sbr.rel (%p152) target = $region12
      $region11: #{tpu_custom_call.1} parent=5 // pred_region
        %s156 = ssub.s32 %s22, 1
      $region12: #{tpu_custom_call.1} parent=5 // pred_fallthru
        _
      %p157 = scmp.lt.s32.totalorder %s22, 2
      // Predicated region
      $region13: #{tpu_custom_call.1} parent=5 // pred_check
        %p158 = pneg %p157
      $region14: #{tpu_custom_call.1} parent=5 // pred_check_branch
        %160 = sbr.rel (%p158) target = $region16
      $region15: #{tpu_custom_call.1} parent=5 // pred_region
        // Predicated region
        $region17: #{tpu_custom_call.1} parent=15 // pred_check
          %p161 = pneg %p56
        $region18: #{tpu_custom_call.1} parent=15 // pred_check_branch
          %163 = sbr.rel (%p161) target = $region20
        $region19: #{tpu_custom_call.1} parent=15 // pred_region
          %s164 = sand.u32 %s46, 1
          %s165 = scalar_lea.sflag [#allocation3], %s164
          %s166 = sand.u32 %s46, 1
          %s167 = smul.addr %s166, 32
          %s168 = scalar_lea.vmem [#allocation2], %s167
          %s169 = sadd.s32 %s29, %s30
          %s170 = smul.u32 4, %s169
          %172 = vsyncadd %s165, 0
          %s173 = smul.addr %s170, 8
          %s174 = scalar_lea.hbm %s0, %s173
          %s175 = sshll.u32 %s174, 4
          %s176 = int_to_ptr.hbm [resolvable:$true] %s175
          %s177 = sshll.u32 %s168, 4
          %s178 = int_to_ptr.vmem [resolvable:$true] %s177
          %183 = dma.hbm_to_vmem [thread:$0]  %s176, 512, %s178, %s165, 128, 128, 8
        $region20: #{tpu_custom_call.1} parent=15 // pred_fallthru
          _
        // Predicated region
        $region21: #{tpu_custom_call.1} parent=15 // pred_check
          %p184 = pneg %p84
        $region22: #{tpu_custom_call.1} parent=15 // pred_check_branch
          %186 = sbr.rel (%p184) target = $region24
        $region23: #{tpu_custom_call.1} parent=15 // pred_region
          %s187 = sand.u32 %s74, 1
          %s188 = scalar_lea.sflag [#allocation6], %s187
          %s189 = sand.u32 %s74, 1
          %s190 = smul.addr %s189, 8
          %s191 = scalar_lea.vmem [#allocation5], %s190
          %s192 = sadd.s32 %s29, %s30
          %194 = vsyncadd %s188, 0
          %s195 = smul.addr %s192, 8
          %s196 = scalar_lea.hbm %s1, %s195
          %s198 = sshll.u32 %s196, 4
          %s199 = int_to_ptr.hbm [resolvable:$true] %s198
          %s200 = sshll.u32 %s191, 4
          %s201 = int_to_ptr.vmem [resolvable:$true] %s200
          %203 = dma.hbm_to_vmem [thread:$0]  %s199, 128, %s201, %s188
        $region24: #{tpu_custom_call.1} parent=15 // pred_fallthru
          _
      $region16: #{tpu_custom_call.1} parent=5 // pred_fallthru
        _
      %p204 = scmp.le.s32.totalorder 1, %s22
      %p205 = scmp.lt.s32.totalorder %s22, 3
      %p206 = pnand %p204, %p205
      %p207 = pneg %p206
      // Predicated region
      $region25: #{tpu_custom_call.1} parent=5 // pred_check
        _
      $region26: #{tpu_custom_call.1} parent=5 // pred_check_branch
        %209 = sbr.rel (%p206) target = $region28
      $region27: #{tpu_custom_call.1} parent=5 // pred_region
        %s210 = ssub.s32 %s22, 1
        %s211 = sand.u32 %s49, 1
        %s212 = scalar_lea.sflag [#allocation3], %s211
        %s213 = sand.u32 %s49, 1
        %s214 = smul.addr %s213, 32
        %s215 = scalar_lea.vmem [#allocation2], %s214
        // Predicated region
        $region29: #{tpu_custom_call.1} parent=27 // pred_check
          %p216 = pneg %p62
        $region30: #{tpu_custom_call.1} parent=27 // pred_check_branch
          %218 = sbr.rel (%p216) target = $region32
        $region31: #{tpu_custom_call.1} parent=27 // pred_region
          %220 = dma.done %s212, 512
        $region32: #{tpu_custom_call.1} parent=27 // pred_fallthru
          _
        %s221 = sand.u32 %s77, 1
        %s222 = scalar_lea.sflag [#allocation6], %s221
        %s223 = sand.u32 %s77, 1
        %s224 = smul.addr %s223, 8
        %s225 = scalar_lea.vmem [#allocation5], %s224
        // Predicated region
        $region33: #{tpu_custom_call.1} parent=27 // pred_check
          %p226 = pneg %p90
        $region34: #{tpu_custom_call.1} parent=27 // pred_check_branch
          %228 = sbr.rel (%p226) target = $region36
        $region35: #{tpu_custom_call.1} parent=27 // pred_region
          %230 = dma.done %s222, 128
        $region36: #{tpu_custom_call.1} parent=27 // pred_fallthru
          _
        %s231 = sand.u32 %s49, 1
        %s232 = scalar_lea.sflag [#allocation3], %s231
        %s233 = sand.u32 %s49, 1
        %s234 = smul.addr %s233, 32
        %s235 = scalar_lea.vmem [#allocation2], %s234
        %p236 = pneg %p62
        %p237 = pneg %p59
        %s238 = sand.u32 %s77, 1
        %s239 = scalar_lea.sflag [#allocation6], %s238
        %s240 = sand.u32 %s77, 1
        %s241 = smul.addr %s240, 8
        %s242 = scalar_lea.vmem [#allocation5], %s241
        %p243 = pneg %p90
        %p244 = pneg %p87
        %p245 = pneg %p116
        %p246 = pneg %p113
        %s247 = sand.u32 %s103, 1
        %s248 = scalar_lea.sflag [#allocation4], %s247
        %s249 = sand.u32 %s103, 1
        %s250 = smul.addr %s249, 8
        %s251 = scalar_lea.vmem [#allocation7], %s250
        %p252 = pneg %p142
        %p253 = pneg %p139
        %s254 = sand.u32 %s129, 1
        %s255 = scalar_lea.sflag [#allocation9], %s254
        %s256 = sand.u32 %s129, 1
        %s257 = smul.addr %s256, 8
        %s258 = scalar_lea.vmem [#allocation8], %s257
        %s259 = sadd.s32 %s31, %s32
        %s260 = smul.u32 4, %s259
        %s261 = sadd.s32 %s31, %s32
        %p262 = scmp.eq.s32.totalorder %s32, 0
        // Predicated region
        $region37: #{tpu_custom_call.1} parent=27 // pred_check
          %p263 = pneg %p262
        $region38: #{tpu_custom_call.1} parent=27 // pred_check_branch
          %265 = sbr.rel (%p263) target = $region40
        $region39: #{tpu_custom_call.1} parent=27 // pred_region
          %266 = vst [vmem:[%s251] sm:$0xff] 0.0
          %267 = vst [vmem:[%s258] sm:$0xff] 0.0
        $region40: #{tpu_custom_call.1} parent=27 // pred_fallthru
          _
        %v268 = vld [vmem:[%s215] sm:$0xff]
        %v269 = vld [vmem:[%s215 + $0x8] sm:$0xff]
        %v270 = vld [vmem:[%s215 + $0x10] sm:$0xff]
        %v271 = vld [vmem:[%s215 + $0x18] sm:$0xff]
        %v272 = vld [vmem:[%s225] sm:$0xff]
        %v273 = vunpack.c.0.s8 %v272
        %v274 = vunpack.c.1.s8 %v272
        %v275 = vunpack.c.2.s8 %v272
        %v276 = vunpack.c.3.s8 %v272
        %vm277 = vcmp.eq.s32.totalorder %v273, 0
        %vm278 = vcmp.eq.s32.totalorder %v274, 0
        %vm279 = vcmp.eq.s32.totalorder %v275, 0
        %vm280 = vcmp.eq.s32.totalorder %v276, 0
        %v281 = vsel %vm277, 1, 0
        %v282 = vsel %vm278, 1, 0
        %v283 = vsel %vm279, 1, 0
        %v284 = vsel %vm280, 1, 0
        %v285 = vcvt.s32.f32 %v281
        %v286 = vcvt.s32.f32 %v282
        %v287 = vcvt.s32.f32 %v283
        %v288 = vcvt.s32.f32 %v284
        %v289 = vld [vmem:[%s251] sm:$0x1]
        %v290 = vmul.f32 %v285, %v268
        %v291 = vmul.f32 %v286, %v269
        %v292 = vmul.f32 %v287, %v270
        %v293 = vmul.f32 %v288, %v271
        %v294 = vadd.f32 %v290, %v291
        %v295 = vadd.f32 %v294, %v292
        %v296 = vadd.f32 %v295, %v293
        %v297 = vrot.slane %v296, 4
        %v298 = vadd.f32 %v296, %v297
        %v299 = vrot.slane %v298, 2
        %v300 = vadd.f32 %v298, %v299
        %v301 = vrot.slane %v300, 1
        %v302 = vadd.f32 %v300, %v301
        %v303 = vadd.f32 %v289, %v302
        %304 = vst [vmem:[%s251] sm:$0x1] %v303
        %v305 = vld [vmem:[%s258] sm:$0x1]
        %v306 = vadd.f32 %v285, %v286
        %v307 = vadd.f32 %v306, %v287
        %v308 = vadd.f32 %v307, %v288
        %v309 = vrot.slane %v308, 4
        %v310 = vadd.f32 %v308, %v309
        %v311 = vrot.slane %v310, 2
        %v312 = vadd.f32 %v310, %v311
        %v313 = vrot.slane %v312, 1
        %v314 = vadd.f32 %v312, %v313
        %v315 = vadd.f32 %v305, %v314
        %316 = vst [vmem:[%s258] sm:$0x1] %v315
        %vm317 = vcmp.eq.s32.totalorder %v273, 1
        %vm318 = vcmp.eq.s32.totalorder %v274, 1
        %vm319 = vcmp.eq.s32.totalorder %v275, 1
        %vm320 = vcmp.eq.s32.totalorder %v276, 1
        %v321 = vsel %vm317, 1, 0
        %v322 = vsel %vm318, 1, 0
        %v323 = vsel %vm319, 1, 0
        %v324 = vsel %vm320, 1, 0
        %v325 = vcvt.s32.f32 %v321
        %v326 = vcvt.s32.f32 %v322
        %v327 = vcvt.s32.f32 %v323
        %v328 = vcvt.s32.f32 %v324
        %v329 = vld [vmem:[%s251 + $0x1] sm:$0x1]
        %v330 = vmul.f32 %v325, %v268
        %v331 = vmul.f32 %v326, %v269
        %v332 = vmul.f32 %v327, %v270
        %v333 = vmul.f32 %v328, %v271
        %v334 = vadd.f32 %v330, %v331
        %v335 = vadd.f32 %v334, %v332
        %v336 = vadd.f32 %v335, %v333
        %v337 = vrot.slane %v336, 4
        %v338 = vadd.f32 %v336, %v337
        %v339 = vrot.slane %v338, 2
        %v340 = vadd.f32 %v338, %v339
        %v341 = vrot.slane %v340, 1
        %v342 = vadd.f32 %v340, %v341
        %v343 = vadd.f32 %v329, %v342
        %344 = vst [vmem:[%s251 + $0x1] sm:$0x1] %v343
        %v345 = vld [vmem:[%s258 + $0x1] sm:$0x1]
        %v346 = vadd.f32 %v325, %v326
        %v347 = vadd.f32 %v346, %v327
        %v348 = vadd.f32 %v347, %v328
        %v349 = vrot.slane %v348, 4
        %v350 = vadd.f32 %v348, %v349
        %v351 = vrot.slane %v350, 2
        %v352 = vadd.f32 %v350, %v351
        %v353 = vrot.slane %v352, 1
        %v354 = vadd.f32 %v352, %v353
        %v355 = vadd.f32 %v345, %v354
        %356 = vst [vmem:[%s258 + $0x1] sm:$0x1] %v355
        %vm357 = vcmp.eq.s32.totalorder %v273, 2
        %vm358 = vcmp.eq.s32.totalorder %v274, 2
        %vm359 = vcmp.eq.s32.totalorder %v275, 2
        %vm360 = vcmp.eq.s32.totalorder %v276, 2
        %v361 = vsel %vm357, 1, 0
        %v362 = vsel %vm358, 1, 0
        %v363 = vsel %vm359, 1, 0
        %v364 = vsel %vm360, 1, 0
        %v365 = vcvt.s32.f32 %v361
        %v366 = vcvt.s32.f32 %v362
        %v367 = vcvt.s32.f32 %v363
        %v368 = vcvt.s32.f32 %v364
        %v369 = vld [vmem:[%s251 + $0x2] sm:$0x1]
        %v370 = vmul.f32 %v365, %v268
        %v371 = vmul.f32 %v366, %v269
        %v372 = vmul.f32 %v367, %v270
        %v373 = vmul.f32 %v368, %v271
        %v374 = vadd.f32 %v370, %v371
        %v375 = vadd.f32 %v374, %v372
        %v376 = vadd.f32 %v375, %v373
        %v377 = vrot.slane %v376, 4
        %v378 = vadd.f32 %v376, %v377
        %v379 = vrot.slane %v378, 2
        %v380 = vadd.f32 %v378, %v379
        %v381 = vrot.slane %v380, 1
        %v382 = vadd.f32 %v380, %v381
        %v383 = vadd.f32 %v369, %v382
        %384 = vst [vmem:[%s251 + $0x2] sm:$0x1] %v383
        %v385 = vld [vmem:[%s258 + $0x2] sm:$0x1]
        %v386 = vadd.f32 %v365, %v366
        %v387 = vadd.f32 %v386, %v367
        %v388 = vadd.f32 %v387, %v368
        %v389 = vrot.slane %v388, 4
        %v390 = vadd.f32 %v388, %v389
        %v391 = vrot.slane %v390, 2
        %v392 = vadd.f32 %v390, %v391
        %v393 = vrot.slane %v392, 1
        %v394 = vadd.f32 %v392, %v393
        %v395 = vadd.f32 %v385, %v394
        %396 = vst [vmem:[%s258 + $0x2] sm:$0x1] %v395
        %vm397 = vcmp.eq.s32.totalorder %v273, 3
        %vm398 = vcmp.eq.s32.totalorder %v274, 3
        %vm399 = vcmp.eq.s32.totalorder %v275, 3
        %vm400 = vcmp.eq.s32.totalorder %v276, 3
        %v401 = vsel %vm397, 1, 0
        %v402 = vsel %vm398, 1, 0
        %v403 = vsel %vm399, 1, 0
        %v404 = vsel %vm400, 1, 0
        %v405 = vcvt.s32.f32 %v401
        %v406 = vcvt.s32.f32 %v402
        %v407 = vcvt.s32.f32 %v403
        %v408 = vcvt.s32.f32 %v404
        %v409 = vld [vmem:[%s251 + $0x3] sm:$0x1]
        %v410 = vmul.f32 %v405, %v268
        %v411 = vmul.f32 %v406, %v269
        %v412 = vmul.f32 %v407, %v270
        %v413 = vmul.f32 %v408, %v271
        %v414 = vadd.f32 %v410, %v411
        %v415 = vadd.f32 %v414, %v412
        %v416 = vadd.f32 %v415, %v413
        %v417 = vrot.slane %v416, 4
        %v418 = vadd.f32 %v416, %v417
        %v419 = vrot.slane %v418, 2
        %v420 = vadd.f32 %v418, %v419
        %v421 = vrot.slane %v420, 1
        %v422 = vadd.f32 %v420, %v421
        %v423 = vadd.f32 %v409, %v422
        %424 = vst [vmem:[%s251 + $0x3] sm:$0x1] %v423
        %v425 = vld [vmem:[%s258 + $0x3] sm:$0x1]
        %v426 = vadd.f32 %v405, %v406
        %v427 = vadd.f32 %v426, %v407
        %v428 = vadd.f32 %v427, %v408
        %v429 = vrot.slane %v428, 4
        %v430 = vadd.f32 %v428, %v429
        %v431 = vrot.slane %v430, 2
        %v432 = vadd.f32 %v430, %v431
        %v433 = vrot.slane %v432, 1
        %v434 = vadd.f32 %v432, %v433
        %v435 = vadd.f32 %v425, %v434
        %436 = vst [vmem:[%s258 + $0x3] sm:$0x1] %v435
        %s437 = sand.u32 %s103, 1
        %s438 = scalar_lea.sflag [#allocation4], %s437
        %s439 = sand.u32 %s103, 1
        %s440 = smul.addr %s439, 8
        %s441 = scalar_lea.vmem [#allocation7], %s440
        %s442 = sand.u32 %s129, 1
        %s443 = scalar_lea.sflag [#allocation9], %s442
        %s444 = sand.u32 %s129, 1
        %s445 = smul.addr %s444, 8
        %s446 = scalar_lea.vmem [#allocation8], %s445
        // Predicated region
        $region41: #{tpu_custom_call.1} parent=27 // pred_check
          %p447 = pneg %p113
        $region42: #{tpu_custom_call.1} parent=27 // pred_check_branch
          %449 = sbr.rel (%p447) target = $region44
        $region43: #{tpu_custom_call.1} parent=27 // pred_region
          %451 = vsyncadd %s438, 0
          %s452 = smul.addr %s31, 8
          %s453 = scalar_lea.hbm %s2, %s452
          %s455 = sshll.u32 %s441, 4
          %s456 = int_to_ptr.vmem [resolvable:$true] %s455
          %s457 = sshll.u32 %s453, 4
          %s458 = int_to_ptr.hbm [resolvable:$true] %s457
          %460 = dma.vmem_to_hbm [thread:$0]  %s456, 128, %s458, %s438
        $region44: #{tpu_custom_call.1} parent=27 // pred_fallthru
          _
        // Predicated region
        $region45: #{tpu_custom_call.1} parent=27 // pred_check
          %p461 = pneg %p139
        $region46: #{tpu_custom_call.1} parent=27 // pred_check_branch
          %463 = sbr.rel (%p461) target = $region48
        $region47: #{tpu_custom_call.1} parent=27 // pred_region
          %465 = vsyncadd %s443, 0
          %s466 = smul.addr %s31, 8
          %s467 = scalar_lea.hbm %s3, %s466
          %s469 = sshll.u32 %s446, 4
          %s470 = int_to_ptr.vmem [resolvable:$true] %s469
          %s471 = sshll.u32 %s467, 4
          %s472 = int_to_ptr.hbm [resolvable:$true] %s471
          %474 = dma.vmem_to_hbm [thread:$0]  %s470, 128, %s472, %s443
        $region48: #{tpu_custom_call.1} parent=27 // pred_fallthru
          _
      $region28: #{tpu_custom_call.1} parent=5 // pred_fallthru
        _
      %p475 = scmp.le.s32.totalorder 2, %s22
      // Predicated region
      $region49: #{tpu_custom_call.1} parent=5 // pred_check
        %p476 = pneg %p475
      $region50: #{tpu_custom_call.1} parent=5 // pred_check_branch
        %478 = sbr.rel (%p476) target = $region52
      $region51: #{tpu_custom_call.1} parent=5 // pred_region
        %s479 = ssub.s32 %s22, 2
        // Predicated region
        $region53: #{tpu_custom_call.1} parent=51 // pred_check
          %p480 = pneg %p119
        $region54: #{tpu_custom_call.1} parent=51 // pred_check_branch
          %482 = sbr.rel (%p480) target = $region56
        $region55: #{tpu_custom_call.1} parent=51 // pred_region
          %s483 = sand.u32 %s104, 1
          %s484 = scalar_lea.sflag [#allocation4], %s483
          %s485 = sand.u32 %s104, 1
          %s486 = smul.addr %s485, 8
          %s487 = scalar_lea.vmem [#allocation7], %s486
          %489 = dma.done %s484, 128
        $region56: #{tpu_custom_call.1} parent=51 // pred_fallthru
          _
        // Predicated region
        $region57: #{tpu_custom_call.1} parent=51 // pred_check
          %p490 = pneg %p145
        $region58: #{tpu_custom_call.1} parent=51 // pred_check_branch
          %492 = sbr.rel (%p490) target = $region60
        $region59: #{tpu_custom_call.1} parent=51 // pred_region
          %s493 = sand.u32 %s130, 1
          %s494 = scalar_lea.sflag [#allocation9], %s493
          %s495 = sand.u32 %s130, 1
          %s496 = smul.addr %s495, 8
          %s497 = scalar_lea.vmem [#allocation8], %s496
          %499 = dma.done %s494, 128
        $region60: #{tpu_custom_call.1} parent=51 // pred_fallthru
          _
      $region52: #{tpu_custom_call.1} parent=5 // pred_fallthru
        _
    $region6: #{tpu_custom_call.1} parent=1 // loop_footer
      %s26 = sadd.s32 1, %s22
    $region7: #{tpu_custom_call.1} parent=1 // loop_footer_branch
      %21 = sbr.rel target = $region3
    $region8: #{tpu_custom_call.1} parent=1 // loop_exit
      _
    %500 = vsyncpa [#allocation3], 1
    %s501 = scalar_lea.sflag [#allocation3], 1
    %502 = vsyncpa %s501, 1
    %503 = vsyncpa [#allocation6], 1
    %s504 = scalar_lea.sflag [#allocation6], 1
    %505 = vsyncpa %s504, 1
    %506 = vsyncpa [#allocation4], 1
    %s507 = scalar_lea.sflag [#allocation4], 1
    %508 = vsyncpa %s507, 1
    %509 = vsyncpa [#allocation9], 1
    %s510 = scalar_lea.sflag [#allocation9], 1
    %511 = vsyncpa %s510, 1

</llo_original>
